<compile_context>
chip_gen: v7x
topology: tpu7x:2x2x1
jax: 0.10.0
libtpu: 0.0.40
codegen_flags: <defaults>
</compile_context>

<pallas_src>
import jax
import jax.numpy as jnp
from jax import lax
from jax.experimental import pallas as pl
from jax.experimental.pallas import tpu as pltpu


def _round_up(x, m):
    return ((x + m - 1) // m) * m


def _make_mlp4_kernel(k, W):
    """Build the fused MLP4 kernel for static feature sizes (k input, W hidden)."""
    o_w1 = 0
    o_w2 = k
    o_w3 = k + W
    o_w4 = k + 2 * W
    o_w5 = k + 3 * W          # predict-head weights live in rows [o_w5, o_w5 + 16); row 0 is real

    def kernel(x_ref, w_ref, b_ref, out_ref):
        # Packed biases: (8, W) f32, VMEM-resident (same block every grid step).
        b_all = b_ref[...]

        # Activations for this batch tile, cast once to bf16 for the MXU.
        h = x_ref[...].astype(jnp.bfloat16)                       # (TB, k) bf16

        # 4 hidden Linear + ReLU layers: bf16 matmul operands, f32 accumulate / bias / ReLU.
        for li, (off, rows) in enumerate(
                ((o_w1, k), (o_w2, W), (o_w3, W), (o_w4, W))):
            wl = w_ref[off:off + rows, :]                         # (rows, W) bf16
            z = jnp.dot(h, wl, preferred_element_type=jnp.float32)
            z = z + b_all[li:li + 1, :]                           # (TB, W) f32
            h = jnp.maximum(z, 0.0).astype(jnp.bfloat16)          # back to bf16 for next MXU op

        # Predict head, produced directly in lane-dense (1, TB) orientation:
        # (16, W) @ (TB, W)^T -> (16, TB); only row 0 carries real weights.
        w5 = w_ref[o_w5:o_w5 + 16, :]                             # (16, W) bf16
        head = lax.dot_general(
            w5, h,
            dimension_numbers=(((1,), (1,)), ((), ())),           # contract the feature dim
            preferred_element_type=jnp.float32)                   # (16, TB) f32
        b5 = b_all[4:5, 0:1]                                      # (1, 1) predict bias
        out_ref[0] = head[0:1, :] + b5                            # lane-dense (1, TB) row

    return kernel


def pack_mlp4_params(params):
    """Pack 5 (W, b) pairs into one bf16 weight buffer and one f32 bias buffer.

    Weight buffer rows: [w1 (k rows) | w2 (W) | w3 (W) | w4 (W) | w5^T (1) | zero pad].
    Bias buffer rows:   [b1, b2, b3, b4, b5-at-(4,0), zero pad] with shape (8, W).
    """
    (w1, b1), (w2, b2), (w3, b3), (w4, b4), (w5, b5) = params
    k, W = w1.shape
    rows_pad = _round_up(k + 3 * W + 16, 16)

    wp = jnp.zeros((rows_pad, W), jnp.bfloat16)
    wp = wp.at[0:k].set(w1.astype(jnp.bfloat16))
    wp = wp.at[k:k + W].set(w2.astype(jnp.bfloat16))
    wp = wp.at[k + W:k + 2 * W].set(w3.astype(jnp.bfloat16))
    wp = wp.at[k + 2 * W:k + 3 * W].set(w4.astype(jnp.bfloat16))
    wp = wp.at[k + 3 * W:k + 3 * W + 1].set(w5.T.astype(jnp.bfloat16))

    bp = jnp.zeros((8, W), jnp.float32)
    bp = bp.at[0:1].set(b1)
    bp = bp.at[1:2].set(b2)
    bp = bp.at[2:3].set(b3)
    bp = bp.at[3:4].set(b4)
    bp = bp.at[4, 0].set(b5[0, 0])
    return wp, bp


def mlp4_forward(x, params, *, block_batch=256):
    """x: (B, k) f32; params: list of (W, b) pairs with W: (in, out), b: (1, out)."""
    B, k = x.shape
    W = params[0][0].shape[1]
    wp, bp = pack_mlp4_params(params)
    rows_pad = wp.shape[0]

    # Batch tile: multiple of 8 sublanes; 256 rows keeps the output row lane-dense (>=128).
    TB = _round_up(min(block_batch, _round_up(B, 8)), 8)
    num_tiles = (B + TB - 1) // TB
    B_pad = num_tiles * TB
    if B_pad != B:
        x = jnp.pad(x, ((0, B_pad - B), (0, 0)))          # tail padding; sliced off below

    out = pl.pallas_call(
        _make_mlp4_kernel(k, W),
        out_shape=jax.ShapeDtypeStruct((num_tiles, 1, TB), jnp.float32),
        grid=(num_tiles,),
        in_specs=[
            pl.BlockSpec((TB, k), lambda i: (i, 0)),         # activations: streamed / pipelined
            pl.BlockSpec((rows_pad, W), lambda i: (0, 0)),   # packed weights: VMEM-resident
            pl.BlockSpec((8, W), lambda i: (0, 0)),          # packed biases: VMEM-resident
        ],
        out_specs=pl.BlockSpec((1, 1, TB), lambda i: (i, 0, 0)),   # lane-dense output rows
        compiler_params=pltpu.CompilerParams(
            dimension_semantics=("parallel",)),              # shard batch axis across TCs (v7x)
    )(x, wp, bp)

    return out.reshape(B_pad, 1)[:B]


def init_mlp4_params(key, k, W):
    """Deterministic PyTorch-Linear-style init: U(-1/sqrt(fan_in), 1/sqrt(fan_in))."""
    dims = [(k, W), (W, W), (W, W), (W, W), (W, 1)]
    params = []
    for (fan_in, fan_out) in dims:
        key, kw, kb = jax.random.split(key, 3)
        bound = 1.0 / jnp.sqrt(jnp.float32(fan_in))
        w = jax.random.uniform(kw, (fan_in, fan_out), jnp.float32, -bound, bound)
        b = jax.random.uniform(kb, (1, fan_out), jnp.float32, -bound, bound)
        params.append((w, b))
    return params


def mlp4_reference(x, params):
    """Pure f32 reference matching the PyTorch module semantics."""
    h = x
    for (w, b) in params[:-1]:
        h = jnp.maximum(h @ w + b, 0.0)
    w, b = params[-1]
    return h @ w + b


def mlp4_reference_bf16(x, params):
    """Reference emulating the kernel numerics: bf16 matmul operands, f32 accum/bias/ReLU."""
    h = x
    for (w, b) in params[:-1]:
        z = jnp.dot(h.astype(jnp.bfloat16), w.astype(jnp.bfloat16),
                    preferred_element_type=jnp.float32) + b
        h = jnp.maximum(z, 0.0)
    w, b = params[-1]
    return jnp.dot(h.astype(jnp.bfloat16), w.astype(jnp.bfloat16),
                   preferred_element_type=jnp.float32) + b


if __name__ == "__main__":
    key = jax.random.PRNGKey(0)
    k_in, W_hidden, batch = 16, 32, 1024

    key, kx = jax.random.split(key)
    x = jax.random.normal(kx, (batch, k_in), jnp.float32)
    params = init_mlp4_params(key, k_in, W_hidden)

    out = jax.block_until_ready(mlp4_forward(x, params, block_batch=256))
    assert out.shape == (batch, 1)

    # Strict check against a reference that uses the same numerics as the kernel
    # (bf16 matmul operands, f32 accumulation / bias / ReLU).
    ref_bf16 = mlp4_reference_bf16(x, params)
    assert jnp.allclose(out, ref_bf16, atol=2e-3, rtol=2e-3), "mismatch vs bf16-emulated reference"

    # Loose check against the pure-f32 module semantics (bf16 operand rounding tolerance).
    ref_f32 = mlp4_reference(x, params)
    assert jnp.allclose(out, ref_f32, atol=5e-2, rtol=5e-2), "mismatch vs f32 reference"

    print("KERNEL_OK")
</pallas_src>

<mosaic_0001>
module attributes {stable_mosaic.version = 11 : i64} {
  func.func @kernel(%arg0: i32, %arg1: memref<256x16xf32, #tpu.memory_space<vmem>>, %arg2: memref<128x32xbf16, #tpu.memory_space<vmem>>, %arg3: memref<8x32xf32, #tpu.memory_space<vmem>>, %arg4: memref<1x1x256xf32, #tpu.memory_space<vmem>>) attributes {dimension_semantics = [#tpu.dimension_semantics<parallel>], iteration_bounds = array<i64: 4>, scalar_prefetch = 0 : i64, scratch_operands = 0 : i64, tpu.core_type = #tpu.core_type<tc>, window_params = [{transform_indices = @transform_0, window_bounds = array<i64: 256, 16>}, {pipeline_mode = #tpu.pipeline_mode<synchronous>, transform_indices = @transform_1, window_bounds = array<i64: 128, 32>}, {pipeline_mode = #tpu.pipeline_mode<synchronous>, transform_indices = @transform_2, window_bounds = array<i64: 8, 32>}, {transform_indices = @transform_3, window_bounds = array<i64: 1, 1, 256>}]} {
    %c0 = arith.constant 0 : index
    %c0_0 = arith.constant 0 : index
    %0 = vector.load %arg3[%c0, %c0_0] : memref<8x32xf32, #tpu.memory_space<vmem>>, vector<8x32xf32>
    %c0_1 = arith.constant 0 : index
    %c0_2 = arith.constant 0 : index
    %1 = vector.load %arg1[%c0_1, %c0_2] : memref<256x16xf32, #tpu.memory_space<vmem>>, vector<256x16xf32>
    %2 = arith.truncf %1 : vector<256x16xf32> to vector<256x16xbf16>
    %c0_3 = arith.constant 0 : index
    %c0_4 = arith.constant 0 : index
    %3 = vector.load %arg2[%c0_3, %c0_4] : memref<128x32xbf16, #tpu.memory_space<vmem>>, vector<16x32xbf16>
    %cst = arith.constant dense<0.000000e+00> : vector<256x32xf32>
    %4 = tpu.matmul %2, %3, %cst {dimension_numbers = #tpu.dot_dimension_numbers<[1], [0], [0], [1], [0, 0, 1, 1], [], []>} : vector<256x16xbf16>, vector<16x32xbf16>, vector<256x32xf32> -> vector<256x32xf32>
    %5 = vector.extract_strided_slice %0 {offsets = [0, 0], sizes = [1, 32], strides = [1, 1]} : vector<8x32xf32> to vector<1x32xf32>
    %6 = vector.broadcast %5 : vector<1x32xf32> to vector<256x32xf32>
    %7 = arith.addf %4, %6 : vector<256x32xf32>
    %cst_5 = arith.constant 0.000000e+00 : f32
    %8 = vector.broadcast %cst_5 : f32 to vector<256x32xf32>
    %9 = arith.maximumf %7, %8 : vector<256x32xf32>
    %10 = arith.truncf %9 : vector<256x32xf32> to vector<256x32xbf16>
    %c16 = arith.constant 16 : index
    %c0_6 = arith.constant 0 : index
    %11 = vector.load %arg2[%c16, %c0_6] : memref<128x32xbf16, #tpu.memory_space<vmem>>, vector<32x32xbf16>
    %cst_7 = arith.constant dense<0.000000e+00> : vector<256x32xf32>
    %12 = tpu.matmul %10, %11, %cst_7 {dimension_numbers = #tpu.dot_dimension_numbers<[1], [0], [0], [1], [0, 0, 1, 1], [], []>} : vector<256x32xbf16>, vector<32x32xbf16>, vector<256x32xf32> -> vector<256x32xf32>
    %13 = vector.extract_strided_slice %0 {offsets = [1, 0], sizes = [1, 32], strides = [1, 1]} : vector<8x32xf32> to vector<1x32xf32>
    %14 = vector.broadcast %13 : vector<1x32xf32> to vector<256x32xf32>
    %15 = arith.addf %12, %14 : vector<256x32xf32>
    %cst_8 = arith.constant 0.000000e+00 : f32
    %16 = vector.broadcast %cst_8 : f32 to vector<256x32xf32>
    %17 = arith.maximumf %15, %16 : vector<256x32xf32>
    %18 = arith.truncf %17 : vector<256x32xf32> to vector<256x32xbf16>
    %c48 = arith.constant 48 : index
    %c0_9 = arith.constant 0 : index
    %19 = vector.load %arg2[%c48, %c0_9] : memref<128x32xbf16, #tpu.memory_space<vmem>>, vector<32x32xbf16>
    %cst_10 = arith.constant dense<0.000000e+00> : vector<256x32xf32>
    %20 = tpu.matmul %18, %19, %cst_10 {dimension_numbers = #tpu.dot_dimension_numbers<[1], [0], [0], [1], [0, 0, 1, 1], [], []>} : vector<256x32xbf16>, vector<32x32xbf16>, vector<256x32xf32> -> vector<256x32xf32>
    %21 = vector.extract_strided_slice %0 {offsets = [2, 0], sizes = [1, 32], strides = [1, 1]} : vector<8x32xf32> to vector<1x32xf32>
    %22 = vector.broadcast %21 : vector<1x32xf32> to vector<256x32xf32>
    %23 = arith.addf %20, %22 : vector<256x32xf32>
    %cst_11 = arith.constant 0.000000e+00 : f32
    %24 = vector.broadcast %cst_11 : f32 to vector<256x32xf32>
    %25 = arith.maximumf %23, %24 : vector<256x32xf32>
    %26 = arith.truncf %25 : vector<256x32xf32> to vector<256x32xbf16>
    %c80 = arith.constant 80 : index
    %c0_12 = arith.constant 0 : index
    %27 = vector.load %arg2[%c80, %c0_12] : memref<128x32xbf16, #tpu.memory_space<vmem>>, vector<32x32xbf16>
    %cst_13 = arith.constant dense<0.000000e+00> : vector<256x32xf32>
    %28 = tpu.matmul %26, %27, %cst_13 {dimension_numbers = #tpu.dot_dimension_numbers<[1], [0], [0], [1], [0, 0, 1, 1], [], []>} : vector<256x32xbf16>, vector<32x32xbf16>, vector<256x32xf32> -> vector<256x32xf32>
    %29 = vector.extract_strided_slice %0 {offsets = [3, 0], sizes = [1, 32], strides = [1, 1]} : vector<8x32xf32> to vector<1x32xf32>
    %30 = vector.broadcast %29 : vector<1x32xf32> to vector<256x32xf32>
    %31 = arith.addf %28, %30 : vector<256x32xf32>
    %cst_14 = arith.constant 0.000000e+00 : f32
    %32 = vector.broadcast %cst_14 : f32 to vector<256x32xf32>
    %33 = arith.maximumf %31, %32 : vector<256x32xf32>
    %34 = arith.truncf %33 : vector<256x32xf32> to vector<256x32xbf16>
    %c112 = arith.constant 112 : index
    %c0_15 = arith.constant 0 : index
    %35 = vector.load %arg2[%c112, %c0_15] : memref<128x32xbf16, #tpu.memory_space<vmem>>, vector<16x32xbf16>
    %cst_16 = arith.constant dense<0.000000e+00> : vector<16x256xf32>
    %36 = tpu.matmul %35, %34, %cst_16 {dimension_numbers = #tpu.dot_dimension_numbers<[1], [1], [0], [0], [0, 0, 1, 0], [], []>} : vector<16x32xbf16>, vector<256x32xbf16>, vector<16x256xf32> -> vector<16x256xf32>
    %37 = vector.extract_strided_slice %0 {offsets = [4, 0], sizes = [1, 1], strides = [1, 1]} : vector<8x32xf32> to vector<1x1xf32>
    %38 = vector.extract_strided_slice %36 {offsets = [0, 0], sizes = [1, 256], strides = [1, 1]} : vector<16x256xf32> to vector<1x256xf32>
    %39 = vector.broadcast %37 : vector<1x1xf32> to vector<1x256xf32>
    %40 = arith.addf %38, %39 : vector<1x256xf32>
    %c0_17 = arith.constant 0 : index
    %c0_18 = arith.constant 0 : index
    %c0_19 = arith.constant 0 : index
    %41 = vector.load %arg4[%c0_17, %c0_18, %c0_19] : memref<1x1x256xf32, #tpu.memory_space<vmem>>, vector<1x1x256xf32>
    %42 = vector.shape_cast %41 : vector<1x1x256xf32> to vector<1x256xf32>
    %43 = vector.shape_cast %40 : vector<1x256xf32> to vector<1x1x256xf32>
    tpu.vector_store %arg4[%c0_17, %c0_18, %c0_19], %43 {strides = array<i32>} : memref<1x1x256xf32, #tpu.memory_space<vmem>>, vector<1x1x256xf32>,
    return
  }
  func.func @transform_0(%arg0: i32) -> (i32, i32) {
    %c0_i32 = arith.constant 0 : i32
    %c0_i32_0 = arith.constant 0 : i32
    return %arg0, %c0_i32 : i32, i32
  }
  func.func @transform_1(%arg0: i32) -> (i32, i32) {
    %c0_i32 = arith.constant 0 : i32
    %c0_i32_0 = arith.constant 0 : i32
    %c0_i32_1 = arith.constant 0 : i32
    return %c0_i32, %c0_i32_0 : i32, i32
  }
  func.func @transform_2(%arg0: i32) -> (i32, i32) {
    %c0_i32 = arith.constant 0 : i32
    %c0_i32_0 = arith.constant 0 : i32
    %c0_i32_1 = arith.constant 0 : i32
    return %c0_i32, %c0_i32_0 : i32, i32
  }
  func.func @transform_3(%arg0: i32) -> (i32, i32, i32) {
    %c0_i32 = arith.constant 0 : i32
    %c0_i32_0 = arith.constant 0 : i32
    %c0_i32_1 = arith.constant 0 : i32
    return %arg0, %c0_i32, %c0_i32_0 : i32, i32, i32
  }
}

</mosaic_0001>

<llo_original>
// kernel: tpu_custom_call.1
$region0: #{tpu_custom_call.1}
  #allocation0 [shape = 'u32[]', space=smem, size = 0x4, offset = 0x4, fixed_abs, tag = 'smem constant byte address 0x4 - core index']
  #allocation1 [shape = 'u32[144,128]{1,0:T(1,128)}', space=vmem, size = 0x12000, scoped, tag = 'internal scratch']
  %s0 = inlined_call_operand.vmem [shape: f32[1024,16], index: 0, kind: input, shape index: {}]
  %s1 = inlined_call_operand.vmem [shape: bf16[128,32], index: 1, kind: input, shape index: {}]
  %s2 = inlined_call_operand.vmem [shape: f32[8,32], index: 2, kind: input, shape index: {}]
  %s3 = inlined_call_operand.hbm [shape: f32[4,1,256], index: 3, kind: output, shape index: {}]
  %s4 = sld [smem:[#allocation0]]
  $region45: #{tpu_custom_call.1} parent=0
    _
  %s6 = ssub.s32 1, %s4
  %s7 = scalar_select 0, %s6, %s4
  $region1: #{tpu_custom_call.1} parent=0
    #allocation2 [shape = 'u8[2048]{0}', space=vmem, size = 0x800, scoped, tag = 'output window, operand 0']
    #allocation3 [shape = 's32[2]{0}', space=sflag, size = 0x8, scoped, tag = 'scoped memory for tpu_custom_call.1']
    %8 = vsyncpa [#allocation3], 0
    %s9 = scalar_lea.sflag [#allocation3], 1
    %10 = vsyncpa %s9, 0
    loop: start=0, step=1, limit=6
    $region2: #{tpu_custom_call.1} parent=1 // loop_pre_header
      _
    $region3: #{tpu_custom_call.1} parent=1 // loop_header
      %s12 = sphi 0, %s16
      %p13 = scmp.ge.s32.totalorder %s12, 6
      %s22 = sphi 0, %s24
      %s25 = sphi 0, %s22
      %s26 = sphi 0, %s25
      %s42 = sphi 0, %s26
      %s46 = sphi 0, %s46
      %s48 = sphi 0, %s46
      %s49 = sphi 0, %s48
      %s63 = sphi 0, %s49
      %s67 = sphi 0, %s67
      %s69 = sphi 0, %s67
      %s70 = sphi 0, %s69
      %s84 = sphi 0, %s70
      %s90 = sphi 0, %s92
      %s93 = sphi 0, %s90
      %s94 = sphi 0, %s93
      %s110 = sphi 0, %s94
    $region4: #{tpu_custom_call.1} parent=1 // loop_header_branch
      %15 = sbr.rel (%p13) target = $region8
    $region5: #{tpu_custom_call.1} parent=1 // loop_body
      %s17 = ssub.s32 %s12, 1
      %s18 = ssub.s32 %s12, 2
      %s19 = sadd.s32 %s12, 1
      %s20 = ssub.s32 %s12, %s19
      %p21 = scmp.eq.s32.totalorder %s20, 0
      %s23 = sadd.s32 %s22, 1
      %s24 = scalar_select %p21, %s22, %s23
      %p27 = pneg %p21
      %p28 = scmp.eq.s32.totalorder %s12, 3
      %p29 = por %p27, %p28
      %p30 = scmp.ne.s32.totalorder %s22, %s25
      %p31 = scmp.eq.s32.totalorder %s12, 0
      %p32 = por %p30, %p31
      %p33 = scmp.ne.s32.totalorder %s22, %s25
      %p34 = scmp.eq.s32.totalorder %s17, 3
      %p35 = por %p33, %p34
      %p36 = scmp.ne.s32.totalorder %s25, %s26
      %p37 = scmp.eq.s32.totalorder %s17, 0
      %p38 = por %p36, %p37
      %p39 = scmp.ne.s32.totalorder %s25, %s26
      %p40 = scmp.eq.s32.totalorder %s18, 3
      %p41 = por %p39, %p40
      %p43 = scmp.ne.s32.totalorder %s26, %s42
      %p44 = scmp.eq.s32.totalorder %s18, 0
      %p45 = por %p43, %p44
      %s47 = sadd.s32 %s46, 1
      %p50 = scmp.eq.s32.totalorder %s12, 3
      %p51 = scmp.ne.s32.totalorder %s46, %s48
      %p52 = scmp.eq.s32.totalorder %s12, 0
      %p53 = por %p51, %p52
      %p54 = scmp.ne.s32.totalorder %s46, %s48
      %p55 = scmp.eq.s32.totalorder %s17, 3
      %p56 = por %p54, %p55
      %p57 = scmp.ne.s32.totalorder %s48, %s49
      %p58 = scmp.eq.s32.totalorder %s17, 0
      %p59 = por %p57, %p58
      %p60 = scmp.ne.s32.totalorder %s48, %s49
      %p61 = scmp.eq.s32.totalorder %s18, 3
      %p62 = por %p60, %p61
      %p64 = scmp.ne.s32.totalorder %s49, %s63
      %p65 = scmp.eq.s32.totalorder %s18, 0
      %p66 = por %p64, %p65
      %s68 = sadd.s32 %s67, 1
      %p71 = scmp.eq.s32.totalorder %s12, 3
      %p72 = scmp.ne.s32.totalorder %s67, %s69
      %p73 = scmp.eq.s32.totalorder %s12, 0
      %p74 = por %p72, %p73
      %p75 = scmp.ne.s32.totalorder %s67, %s69
      %p76 = scmp.eq.s32.totalorder %s17, 3
      %p77 = por %p75, %p76
      %p78 = scmp.ne.s32.totalorder %s69, %s70
      %p79 = scmp.eq.s32.totalorder %s17, 0
      %p80 = por %p78, %p79
      %p81 = scmp.ne.s32.totalorder %s69, %s70
      %p82 = scmp.eq.s32.totalorder %s18, 3
      %p83 = por %p81, %p82
      %p85 = scmp.ne.s32.totalorder %s70, %s84
      %p86 = scmp.eq.s32.totalorder %s18, 0
      %p87 = por %p85, %p86
      %s88 = ssub.s32 %s12, %s19
      %p89 = scmp.eq.s32.totalorder %s88, 0
      %s91 = sadd.s32 %s90, 1
      %s92 = scalar_select %p89, %s90, %s91
      %p95 = pneg %p89
      %p96 = scmp.eq.s32.totalorder %s12, 3
      %p97 = por %p95, %p96
      %p98 = scmp.ne.s32.totalorder %s90, %s93
      %p99 = scmp.eq.s32.totalorder %s12, 0
      %p100 = por %p98, %p99
      %p101 = scmp.ne.s32.totalorder %s90, %s93
      %p102 = scmp.eq.s32.totalorder %s17, 3
      %p103 = por %p101, %p102
      %p104 = scmp.ne.s32.totalorder %s93, %s94
      %p105 = scmp.eq.s32.totalorder %s17, 0
      %p106 = por %p104, %p105
      %p107 = scmp.ne.s32.totalorder %s93, %s94
      %p108 = scmp.eq.s32.totalorder %s18, 3
      %p109 = por %p107, %p108
      %p111 = scmp.ne.s32.totalorder %s94, %s110
      %p112 = scmp.eq.s32.totalorder %s18, 0
      %p113 = por %p111, %p112
      %p114 = scmp.le.s32.totalorder 1, %s12
      %p115 = scmp.lt.s32.totalorder %s12, 5
      %p116 = pnand %p114, %p115
      %p117 = pneg %p116
      // Predicated region
      $region9: #{tpu_custom_call.1} parent=5 // pred_check
        _
      $region10: #{tpu_custom_call.1} parent=5 // pred_check_branch
        %119 = sbr.rel (%p116) target = $region12
      $region11: #{tpu_custom_call.1} parent=5 // pred_region
        %s120 = ssub.s32 %s12, 1
        // Predicated region
        $region13: #{tpu_custom_call.1} parent=11 // pred_check
          %p121 = pneg %p59
        $region14: #{tpu_custom_call.1} parent=11 // pred_check_branch
          %123 = sbr.rel (%p121) target = $region16
        $region15: #{tpu_custom_call.1} parent=11 // pred_region
          _
        $region16: #{tpu_custom_call.1} parent=11 // pred_fallthru
          _
        // Predicated region
        $region17: #{tpu_custom_call.1} parent=11 // pred_check
          %p124 = pneg %p80
        $region18: #{tpu_custom_call.1} parent=11 // pred_check_branch
          %126 = sbr.rel (%p124) target = $region20
        $region19: #{tpu_custom_call.1} parent=11 // pred_region
          _
        $region20: #{tpu_custom_call.1} parent=11 // pred_fallthru
          _
      $region12: #{tpu_custom_call.1} parent=5 // pred_fallthru
        _
      %p127 = scmp.lt.s32.totalorder %s12, 4
      // Predicated region
      $region21: #{tpu_custom_call.1} parent=5 // pred_check
        %p128 = pneg %p127
      $region22: #{tpu_custom_call.1} parent=5 // pred_check_branch
        %130 = sbr.rel (%p128) target = $region24
      $region23: #{tpu_custom_call.1} parent=5 // pred_region
        // Predicated region
        $region25: #{tpu_custom_call.1} parent=23 // pred_check
          %p131 = pneg %p32
        $region26: #{tpu_custom_call.1} parent=23 // pred_check_branch
          %133 = sbr.rel (%p131) target = $region28
        $region27: #{tpu_custom_call.1} parent=23 // pred_region
          %s134 = smul.u32 32, %s12
          %p135 = scmp.lt.s32.totalorder %s134, 127
          %s136 = scalar_select %p135, %s134, 127
          %s137 = smul.addr %s136, 8
          %s138 = scalar_lea.vmem %s0, %s137
          %s139 = smul.u32 32, %s12
        $region28: #{tpu_custom_call.1} parent=23 // pred_fallthru
          _
      $region24: #{tpu_custom_call.1} parent=5 // pred_fallthru
        _
      %p140 = scmp.le.s32.totalorder 1, %s12
      %p141 = scmp.lt.s32.totalorder %s12, 5
      %p142 = pnand %p140, %p141
      %p143 = pneg %p142
      // Predicated region
      $region29: #{tpu_custom_call.1} parent=5 // pred_check
        _
      $region30: #{tpu_custom_call.1} parent=5 // pred_check_branch
        %145 = sbr.rel (%p142) target = $region32
      $region31: #{tpu_custom_call.1} parent=5 // pred_region
        %s146 = ssub.s32 %s12, 1
        %s147 = smul.u32 32, %s17
        %p148 = scmp.lt.s32.totalorder %s147, 127
        %s149 = scalar_select %p148, %s147, 127
        %s150 = smul.addr %s149, 8
        %s151 = scalar_lea.vmem %s0, %s150
        %p152 = pneg %p38
        %p153 = pneg %p35
        %p154 = pneg %p59
        %p155 = pneg %p56
        %p156 = pneg %p80
        %p157 = pneg %p77
        %p158 = pneg %p106
        %p159 = pneg %p103
        %s160 = sand.u32 %s93, 1
        %s161 = scalar_lea.sflag [#allocation3], %s160
        %s162 = sand.u32 %s93, 1
        %s163 = smul.addr %s162, 2
        %s164 = scalar_lea.vmem [#allocation2], %s163
        %s165 = smul.u32 32, %s17
        %p166 = scmp.lt.s32.totalorder %s165, 127
        %s167 = scalar_select %p166, %s165, 127
        %s168 = smul.addr %s167, 8
        %s169 = scalar_lea.vmem %s0, %s168
        %s170 = smul.u32 32, %s17
        %v172 = vld [vmem:[%s2] sm:$0xff]
        %v173 = vld [vmem:[%s169] sm:$0xff]
        %v174 = vld [vmem:[%s169 + $0x8] sm:$0xff]
        %v175 = vld [vmem:[%s169 + $0x10] sm:$0xff]
        %v176 = vld [vmem:[%s169 + $0x18] sm:$0xff]
        %v177 = vld [vmem:[%s169 + $0x20] sm:$0xff]
        %v178 = vld [vmem:[%s169 + $0x28] sm:$0xff]
        %v179 = vld [vmem:[%s169 + $0x30] sm:$0xff]
        %v180 = vld [vmem:[%s169 + $0x38] sm:$0xff]
        %v181 = vld [vmem:[%s169 + $0x40] sm:$0xff]
        %v182 = vld [vmem:[%s169 + $0x48] sm:$0xff]
        %v183 = vld [vmem:[%s169 + $0x50] sm:$0xff]
        %v184 = vld [vmem:[%s169 + $0x58] sm:$0xff]
        %v185 = vld [vmem:[%s169 + $0x60] sm:$0xff]
        %v186 = vld [vmem:[%s169 + $0x68] sm:$0xff]
        %v187 = vld [vmem:[%s169 + $0x70] sm:$0xff]
        %v188 = vld [vmem:[%s169 + $0x78] sm:$0xff]
        %v189 = vld [vmem:[%s169 + $0x80] sm:$0xff]
        %v190 = vld [vmem:[%s169 + $0x88] sm:$0xff]
        %v191 = vld [vmem:[%s169 + $0x90] sm:$0xff]
        %v192 = vld [vmem:[%s169 + $0x98] sm:$0xff]
        %v193 = vld [vmem:[%s169 + $0xa0] sm:$0xff]
        %v194 = vld [vmem:[%s169 + $0xa8] sm:$0xff]
        %v195 = vld [vmem:[%s169 + $0xb0] sm:$0xff]
        %v196 = vld [vmem:[%s169 + $0xb8] sm:$0xff]
        %v197 = vld [vmem:[%s169 + $0xc0] sm:$0xff]
        %v198 = vld [vmem:[%s169 + $0xc8] sm:$0xff]
        %v199 = vld [vmem:[%s169 + $0xd0] sm:$0xff]
        %v200 = vld [vmem:[%s169 + $0xd8] sm:$0xff]
        %v201 = vld [vmem:[%s169 + $0xe0] sm:$0xff]
        %v202 = vld [vmem:[%s169 + $0xe8] sm:$0xff]
        %v203 = vld [vmem:[%s169 + $0xf0] sm:$0xff]
        %v204 = vld [vmem:[%s169 + $0xf8] sm:$0xff]
        %v205 = vpack.c.bf16 %v174, %v173
        %v206 = vpack.c.bf16 %v176, %v175
        %v207 = vpack.c.bf16 %v178, %v177
        %v208 = vpack.c.bf16 %v180, %v179
        %v209 = vpack.c.bf16 %v182, %v181
        %v210 = vpack.c.bf16 %v184, %v183
        %v211 = vpack.c.bf16 %v186, %v185
        %v212 = vpack.c.bf16 %v188, %v187
        %v213 = vpack.c.bf16 %v190, %v189
        %v214 = vpack.c.bf16 %v192, %v191
        %v215 = vpack.c.bf16 %v194, %v193
        %v216 = vpack.c.bf16 %v196, %v195
        %v217 = vpack.c.bf16 %v198, %v197
        %v218 = vpack.c.bf16 %v200, %v199
        %v219 = vpack.c.bf16 %v202, %v201
        %v220 = vpack.c.bf16 %v204, %v203
        %v221 = vld [vmem:[%s1] sm:$0xf]
        %v222 = vld [vmem:[%s1 + $0x4] sm:$0xf]
        %v223 = vlaneseq
        %v224 = vshrl.u32 %v223, 7
        %v225 = vsub.s32 0, %v224
        %v226 = vrot.slane %v172, %v225
        %v229 = vunpack.c.l.b16 %v221
        %v230 = vunpack.c.l.b16 %v222
        %v231 = vpack.c.b16 %v230, %v229
        %vm233 = vcmask 130048
        %v235 = vsel %vm233, %v205, 0
        %v238 = vsel %vm233, %v206, 0
        %v241 = vsel %vm233, %v207, 0
        %v244 = vsel %vm233, %v208, 0
        %v247 = vsel %vm233, %v209, 0
        %v250 = vsel %vm233, %v210, 0
        %v253 = vsel %vm233, %v211, 0
        %v256 = vsel %vm233, %v212, 0
        %v259 = vsel %vm233, %v213, 0
        %v262 = vsel %vm233, %v214, 0
        %v265 = vsel %vm233, %v215, 0
        %v268 = vsel %vm233, %v216, 0
        %v271 = vsel %vm233, %v217, 0
        %v274 = vsel %vm233, %v218, 0
        %v277 = vsel %vm233, %v219, 0
        %v280 = vsel %vm233, %v220, 0
        %282 = vmatprep.subr.bf16.mxu0 0
        %283 = vmatpush1.bf16.msra.mxu0 %v231
        %284 = vmatprep.subr.bf16.mxu0 0
        %285 = vmatpush1.bf16.msra.mxu0 0
        %286 = vmatprep.subr.bf16.mxu0 0
        %287 = vmatpush1.bf16.msra.mxu0 0
        %288 = vmatprep.subr.bf16.mxu0 0
        %289 = vmatpush1.bf16.msra.mxu0 0
        %290 = vmatprep.subr.bf16.mxu0 0
        %291 = vmatpush1.bf16.msra.mxu0 0
        %292 = vmatprep.subr.bf16.mxu0 0
        %293 = vmatpush1.bf16.msra.mxu0 0
        %294 = vmatprep.subr.bf16.mxu0 0
        %295 = vmatpush1.bf16.msra.mxu0 0
        %296 = vmatprep.subr.bf16.mxu0 0
        %297 = vmatpush1.bf16.msra.mxu0 0
        %298 = vmatprep.subr.bf16.mxu0 0
        %299 = vmatpush1.bf16.msra.mxu0 0
        %300 = vmatprep.subr.bf16.mxu0 0
        %301 = vmatpush1.bf16.msra.mxu0 0
        %302 = vmatprep.subr.bf16.mxu0 0
        %303 = vmatpush1.bf16.msra.mxu0 0
        %304 = vmatprep.subr.bf16.mxu0 0
        %305 = vmatpush1.bf16.msra.mxu0 0
        %306 = vmatprep.subr.bf16.mxu0 0
        %307 = vmatpush1.bf16.msra.mxu0 0
        %308 = vmatprep.subr.bf16.mxu0 0
        %309 = vmatpush1.bf16.msra.mxu0 0
        %310 = vmatprep.subr.bf16.mxu0 0
        %311 = vmatpush1.bf16.msra.mxu0 0
        %312 = vmatprep.subr.bf16.mxu0 0
        %313 = vmatpush1.bf16.msra.mxu0 0
        %314 = vmatprep.mubr.bf16.mxu0 0
        %315 = vmatmul.mubr.bf16.gmra.mrb[0].mxu0 %v235
        %v316 = vpop.f32.mrb[0].mxu0
        %v317 = vadd.f32 %v226, %v316
        %v318 = vpop.f32.mrb[0].mxu0
        %v319 = vpop.f32.mrb[0].mxu0
        %v320 = vadd.f32 %v226, %v319
        %v321 = vpop.f32.mrb[0].mxu0
        %322 = vmatprep.mubr.bf16.mxu0 0
        %323 = vmatmul.mubr.bf16.gmra.mrb[0].mxu0 %v238
        %v324 = vpop.f32.mrb[0].mxu0
        %v325 = vadd.f32 %v226, %v324
        %v326 = vpop.f32.mrb[0].mxu0
        %v327 = vpop.f32.mrb[0].mxu0
        %v328 = vadd.f32 %v226, %v327
        %v329 = vpop.f32.mrb[0].mxu0
        %330 = vmatprep.mubr.bf16.mxu0 0
        %331 = vmatmul.mubr.bf16.gmra.mrb[0].mxu0 %v241
        %v332 = vpop.f32.mrb[0].mxu0
        %v333 = vadd.f32 %v226, %v332
        %v334 = vpop.f32.mrb[0].mxu0
        %v335 = vpop.f32.mrb[0].mxu0
        %v336 = vadd.f32 %v226, %v335
        %v337 = vpop.f32.mrb[0].mxu0
        %338 = vmatprep.mubr.bf16.mxu0 0
        %339 = vmatmul.mubr.bf16.gmra.mrb[0].mxu0 %v244
        %v340 = vpop.f32.mrb[0].mxu0
        %v341 = vadd.f32 %v226, %v340
        %v342 = vpop.f32.mrb[0].mxu0
        %v343 = vpop.f32.mrb[0].mxu0
        %v344 = vadd.f32 %v226, %v343
        %v345 = vpop.f32.mrb[0].mxu0
        %346 = vmatprep.mubr.bf16.mxu0 0
        %347 = vmatmul.mubr.bf16.gmra.mrb[0].mxu0 %v247
        %v348 = vpop.f32.mrb[0].mxu0
        %v349 = vadd.f32 %v226, %v348
        %v350 = vpop.f32.mrb[0].mxu0
        %v351 = vpop.f32.mrb[0].mxu0
        %v352 = vadd.f32 %v226, %v351
        %v353 = vpop.f32.mrb[0].mxu0
        %354 = vmatprep.mubr.bf16.mxu0 0
        %355 = vmatmul.mubr.bf16.gmra.mrb[0].mxu0 %v250
        %v356 = vpop.f32.mrb[0].mxu0
        %v357 = vadd.f32 %v226, %v356
        %v358 = vpop.f32.mrb[0].mxu0
        %v359 = vpop.f32.mrb[0].mxu0
        %v360 = vadd.f32 %v226, %v359
        %v361 = vpop.f32.mrb[0].mxu0
        %362 = vmatprep.mubr.bf16.mxu0 0
        %363 = vmatmul.mubr.bf16.gmra.mrb[0].mxu0 %v253
        %v364 = vpop.f32.mrb[0].mxu0
        %v365 = vadd.f32 %v226, %v364
        %v366 = vpop.f32.mrb[0].mxu0
        %v367 = vpop.f32.mrb[0].mxu0
        %v368 = vadd.f32 %v226, %v367
        %v369 = vpop.f32.mrb[0].mxu0
        %370 = vmatprep.mubr.bf16.mxu0 0
        %371 = vmatmul.mubr.bf16.gmra.mrb[0].mxu0 %v256
        %v372 = vpop.f32.mrb[0].mxu0
        %v373 = vadd.f32 %v226, %v372
        %v374 = vpop.f32.mrb[0].mxu0
        %v375 = vpop.f32.mrb[0].mxu0
        %v376 = vadd.f32 %v226, %v375
        %v377 = vpop.f32.mrb[0].mxu0
        %378 = vmatprep.mubr.bf16.mxu0 0
        %379 = vmatmul.mubr.bf16.gmra.mrb[0].mxu0 %v259
        %v380 = vpop.f32.mrb[0].mxu0
        %v381 = vadd.f32 %v226, %v380
        %v382 = vpop.f32.mrb[0].mxu0
        %v383 = vpop.f32.mrb[0].mxu0
        %v384 = vadd.f32 %v226, %v383
        %v385 = vpop.f32.mrb[0].mxu0
        %386 = vmatprep.mubr.bf16.mxu0 0
        %387 = vmatmul.mubr.bf16.gmra.mrb[0].mxu0 %v262
        %v388 = vpop.f32.mrb[0].mxu0
        %v389 = vadd.f32 %v226, %v388
        %v390 = vpop.f32.mrb[0].mxu0
        %v391 = vpop.f32.mrb[0].mxu0
        %v392 = vadd.f32 %v226, %v391
        %v393 = vpop.f32.mrb[0].mxu0
        %394 = vmatprep.mubr.bf16.mxu0 0
        %395 = vmatmul.mubr.bf16.gmra.mrb[0].mxu0 %v265
        %v396 = vpop.f32.mrb[0].mxu0
        %v397 = vadd.f32 %v226, %v396
        %v398 = vpop.f32.mrb[0].mxu0
        %v399 = vpop.f32.mrb[0].mxu0
        %v400 = vadd.f32 %v226, %v399
        %v401 = vpop.f32.mrb[0].mxu0
        %402 = vmatprep.mubr.bf16.mxu0 0
        %403 = vmatmul.mubr.bf16.gmra.mrb[0].mxu0 %v268
        %v404 = vpop.f32.mrb[0].mxu0
        %v405 = vadd.f32 %v226, %v404
        %v406 = vpop.f32.mrb[0].mxu0
        %v407 = vpop.f32.mrb[0].mxu0
        %v408 = vadd.f32 %v226, %v407
        %v409 = vpop.f32.mrb[0].mxu0
        %410 = vmatprep.mubr.bf16.mxu0 0
        %411 = vmatmul.mubr.bf16.gmra.mrb[0].mxu0 %v271
        %v412 = vpop.f32.mrb[0].mxu0
        %v413 = vadd.f32 %v226, %v412
        %v414 = vpop.f32.mrb[0].mxu0
        %v415 = vpop.f32.mrb[0].mxu0
        %v416 = vadd.f32 %v226, %v415
        %v417 = vpop.f32.mrb[0].mxu0
        %418 = vmatprep.mubr.bf16.mxu0 0
        %419 = vmatmul.mubr.bf16.gmra.mrb[0].mxu0 %v274
        %v420 = vpop.f32.mrb[0].mxu0
        %v421 = vadd.f32 %v226, %v420
        %v422 = vpop.f32.mrb[0].mxu0
        %v423 = vpop.f32.mrb[0].mxu0
        %v424 = vadd.f32 %v226, %v423
        %v425 = vpop.f32.mrb[0].mxu0
        %426 = vmatprep.mubr.bf16.mxu0 0
        %427 = vmatmul.mubr.bf16.gmra.mrb[0].mxu0 %v277
        %v428 = vpop.f32.mrb[0].mxu0
        %v429 = vadd.f32 %v226, %v428
        %v430 = vpop.f32.mrb[0].mxu0
        %v431 = vpop.f32.mrb[0].mxu0
        %v432 = vadd.f32 %v226, %v431
        %v433 = vpop.f32.mrb[0].mxu0
        %434 = vmatprep.mubr.bf16.mxu0 0
        %435 = vmatmul.mubr.bf16.gmra.mrb[0].mxu0 %v280
        %v436 = vpop.f32.mrb[0].mxu0
        %v437 = vadd.f32 %v226, %v436
        %v438 = vpop.f32.mrb[0].mxu0
        %v439 = vpop.f32.mrb[0].mxu0
        %v440 = vadd.f32 %v226, %v439
        %v441 = vpop.f32.mrb[0].mxu0
        %442 = vdwg.mxu0
        %v443 = vmax.f32 %v317, 0.0
        %v444 = vmax.f32 %v320, 0.0
        %v445 = vmax.f32 %v325, 0.0
        %v446 = vmax.f32 %v328, 0.0
        %v447 = vmax.f32 %v333, 0.0
        %v448 = vmax.f32 %v336, 0.0
        %v449 = vmax.f32 %v341, 0.0
        %v450 = vmax.f32 %v344, 0.0
        %v451 = vmax.f32 %v349, 0.0
        %v452 = vmax.f32 %v352, 0.0
        %v453 = vmax.f32 %v357, 0.0
        %v454 = vmax.f32 %v360, 0.0
        %v455 = vmax.f32 %v365, 0.0
        %v456 = vmax.f32 %v368, 0.0
        %v457 = vmax.f32 %v373, 0.0
        %v458 = vmax.f32 %v376, 0.0
        %v459 = vmax.f32 %v381, 0.0
        %v460 = vmax.f32 %v384, 0.0
        %v461 = vmax.f32 %v389, 0.0
        %v462 = vmax.f32 %v392, 0.0
        %v463 = vmax.f32 %v397, 0.0
        %v464 = vmax.f32 %v400, 0.0
        %v465 = vmax.f32 %v405, 0.0
        %v466 = vmax.f32 %v408, 0.0
        %v467 = vmax.f32 %v413, 0.0
        %v468 = vmax.f32 %v416, 0.0
        %v469 = vmax.f32 %v421, 0.0
        %v470 = vmax.f32 %v424, 0.0
        %v471 = vmax.f32 %v429, 0.0
        %v472 = vmax.f32 %v432, 0.0
        %v473 = vmax.f32 %v437, 0.0
        %v474 = vmax.f32 %v440, 0.0
        %v475 = vpack.c.bf16 %v444, %v443
        %v476 = vpack.c.bf16 %v446, %v445
        %v477 = vpack.c.bf16 %v448, %v447
        %v478 = vpack.c.bf16 %v450, %v449
        %v479 = vpack.c.bf16 %v452, %v451
        %v480 = vpack.c.bf16 %v454, %v453
        %v481 = vpack.c.bf16 %v456, %v455
        %v482 = vpack.c.bf16 %v458, %v457
        %v483 = vpack.c.bf16 %v460, %v459
        %v484 = vpack.c.bf16 %v462, %v461
        %v485 = vpack.c.bf16 %v464, %v463
        %v486 = vpack.c.bf16 %v466, %v465
        %v487 = vpack.c.bf16 %v468, %v467
        %v488 = vpack.c.bf16 %v470, %v469
        %v489 = vpack.c.bf16 %v472, %v471
        %v490 = vpack.c.bf16 %v474, %v473
        %v491 = vld [vmem:[%s1 + $0x8] sm:$0xf]
        %v492 = vld [vmem:[%s1 + $0xc] sm:$0xf]
        %v493 = vld [vmem:[%s1 + $0x10] sm:$0xf]
        %v494 = vld [vmem:[%s1 + $0x14] sm:$0xf]
        %v495 = vlaneseq
        %v496 = vshrl.u32 %v495, 7
        %v497 = vsub.s32 1, %v496
        %v498 = vrot.slane %v172, %v497
        %v503 = vunpack.c.l.b16 %v491
        %v504 = vunpack.c.l.b16 %v492
        %v505 = vunpack.c.l.b16 %v493
        %v506 = vunpack.c.l.b16 %v494
        %v507 = vpack.c.b16 %v504, %v503
        %v508 = vpack.c.b16 %v506, %v505
        %vm511 = vcmask 261120
        %v513 = vsel %vm511, %v475, 0
        %v516 = vsel %vm511, %v476, 0
        %v519 = vsel %vm511, %v477, 0
        %v522 = vsel %vm511, %v478, 0
        %v525 = vsel %vm511, %v479, 0
        %v528 = vsel %vm511, %v480, 0
        %v531 = vsel %vm511, %v481, 0
        %v534 = vsel %vm511, %v482, 0
        %v537 = vsel %vm511, %v483, 0
        %v540 = vsel %vm511, %v484, 0
        %v543 = vsel %vm511, %v485, 0
        %v546 = vsel %vm511, %v486, 0
        %v549 = vsel %vm511, %v487, 0
        %v552 = vsel %vm511, %v488, 0
        %v555 = vsel %vm511, %v489, 0
        %v558 = vsel %vm511, %v490, 0
        %560 = vmatprep.subr.bf16.mxu0 0
        %561 = vmatpush1.bf16.msra.mxu0 %v507
        %562 = vmatprep.subr.bf16.mxu0 0
        %563 = vmatpush1.bf16.msra.mxu0 %v508
        %564 = vmatprep.subr.bf16.mxu0 0
        %565 = vmatpush1.bf16.msra.mxu0 0
        %566 = vmatprep.subr.bf16.mxu0 0
        %567 = vmatpush1.bf16.msra.mxu0 0
        %568 = vmatprep.subr.bf16.mxu0 0
        %569 = vmatpush1.bf16.msra.mxu0 0
        %570 = vmatprep.subr.bf16.mxu0 0
        %571 = vmatpush1.bf16.msra.mxu0 0
        %572 = vmatprep.subr.bf16.mxu0 0
        %573 = vmatpush1.bf16.msra.mxu0 0
        %574 = vmatprep.subr.bf16.mxu0 0
        %575 = vmatpush1.bf16.msra.mxu0 0
        %576 = vmatprep.subr.bf16.mxu0 0
        %577 = vmatpush1.bf16.msra.mxu0 0
        %578 = vmatprep.subr.bf16.mxu0 0
        %579 = vmatpush1.bf16.msra.mxu0 0
        %580 = vmatprep.subr.bf16.mxu0 0
        %581 = vmatpush1.bf16.msra.mxu0 0
        %582 = vmatprep.subr.bf16.mxu0 0
        %583 = vmatpush1.bf16.msra.mxu0 0
        %584 = vmatprep.subr.bf16.mxu0 0
        %585 = vmatpush1.bf16.msra.mxu0 0
        %586 = vmatprep.subr.bf16.mxu0 0
        %587 = vmatpush1.bf16.msra.mxu0 0
        %588 = vmatprep.subr.bf16.mxu0 0
        %589 = vmatpush1.bf16.msra.mxu0 0
        %590 = vmatprep.subr.bf16.mxu0 0
        %591 = vmatpush1.bf16.msra.mxu0 0
        %592 = vmatprep.mubr.bf16.mxu0 0
        %593 = vmatmul.mubr.bf16.gmra.mrb[0].mxu0 %v513
        %v594 = vpop.f32.mrb[0].mxu0
        %v595 = vadd.f32 %v498, %v594
        %v596 = vpop.f32.mrb[0].mxu0
        %v597 = vpop.f32.mrb[0].mxu0
        %v598 = vadd.f32 %v498, %v597
        %v599 = vpop.f32.mrb[0].mxu0
        %600 = vmatprep.mubr.bf16.mxu0 0
        %601 = vmatmul.mubr.bf16.gmra.mrb[0].mxu0 %v516
        %v602 = vpop.f32.mrb[0].mxu0
        %v603 = vadd.f32 %v498, %v602
        %v604 = vpop.f32.mrb[0].mxu0
        %v605 = vpop.f32.mrb[0].mxu0
        %v606 = vadd.f32 %v498, %v605
        %v607 = vpop.f32.mrb[0].mxu0
        %608 = vmatprep.mubr.bf16.mxu0 0
        %609 = vmatmul.mubr.bf16.gmra.mrb[0].mxu0 %v519
        %v610 = vpop.f32.mrb[0].mxu0
        %v611 = vadd.f32 %v498, %v610
        %v612 = vpop.f32.mrb[0].mxu0
        %v613 = vpop.f32.mrb[0].mxu0
        %v614 = vadd.f32 %v498, %v613
        %v615 = vpop.f32.mrb[0].mxu0
        %616 = vmatprep.mubr.bf16.mxu0 0
        %617 = vmatmul.mubr.bf16.gmra.mrb[0].mxu0 %v522
        %v618 = vpop.f32.mrb[0].mxu0
        %v619 = vadd.f32 %v498, %v618
        %v620 = vpop.f32.mrb[0].mxu0
        %v621 = vpop.f32.mrb[0].mxu0
        %v622 = vadd.f32 %v498, %v621
        %v623 = vpop.f32.mrb[0].mxu0
        %624 = vmatprep.mubr.bf16.mxu0 0
        %625 = vmatmul.mubr.bf16.gmra.mrb[0].mxu0 %v525
        %v626 = vpop.f32.mrb[0].mxu0
        %v627 = vadd.f32 %v498, %v626
        %v628 = vpop.f32.mrb[0].mxu0
        %v629 = vpop.f32.mrb[0].mxu0
        %v630 = vadd.f32 %v498, %v629
        %v631 = vpop.f32.mrb[0].mxu0
        %632 = vmatprep.mubr.bf16.mxu0 0
        %633 = vmatmul.mubr.bf16.gmra.mrb[0].mxu0 %v528
        %v634 = vpop.f32.mrb[0].mxu0
        %v635 = vadd.f32 %v498, %v634
        %v636 = vpop.f32.mrb[0].mxu0
        %v637 = vpop.f32.mrb[0].mxu0
        %v638 = vadd.f32 %v498, %v637
        %v639 = vpop.f32.mrb[0].mxu0
        %640 = vmatprep.mubr.bf16.mxu0 0
        %641 = vmatmul.mubr.bf16.gmra.mrb[0].mxu0 %v531
        %v642 = vpop.f32.mrb[0].mxu0
        %v643 = vadd.f32 %v498, %v642
        %v644 = vpop.f32.mrb[0].mxu0
        %v645 = vpop.f32.mrb[0].mxu0
        %v646 = vadd.f32 %v498, %v645
        %v647 = vpop.f32.mrb[0].mxu0
        %648 = vmatprep.mubr.bf16.mxu0 0
        %649 = vmatmul.mubr.bf16.gmra.mrb[0].mxu0 %v534
        %v650 = vpop.f32.mrb[0].mxu0
        %v651 = vadd.f32 %v498, %v650
        %v652 = vpop.f32.mrb[0].mxu0
        %v653 = vpop.f32.mrb[0].mxu0
        %v654 = vadd.f32 %v498, %v653
        %v655 = vpop.f32.mrb[0].mxu0
        %656 = vmatprep.mubr.bf16.mxu0 0
        %657 = vmatmul.mubr.bf16.gmra.mrb[0].mxu0 %v537
        %v658 = vpop.f32.mrb[0].mxu0
        %v659 = vadd.f32 %v498, %v658
        %v660 = vpop.f32.mrb[0].mxu0
        %v661 = vpop.f32.mrb[0].mxu0
        %v662 = vadd.f32 %v498, %v661
        %v663 = vpop.f32.mrb[0].mxu0
        %664 = vmatprep.mubr.bf16.mxu0 0
        %665 = vmatmul.mubr.bf16.gmra.mrb[0].mxu0 %v540
        %v666 = vpop.f32.mrb[0].mxu0
        %v667 = vadd.f32 %v498, %v666
        %v668 = vpop.f32.mrb[0].mxu0
        %v669 = vpop.f32.mrb[0].mxu0
        %v670 = vadd.f32 %v498, %v669
        %v671 = vpop.f32.mrb[0].mxu0
        %672 = vmatprep.mubr.bf16.mxu0 0
        %673 = vmatmul.mubr.bf16.gmra.mrb[0].mxu0 %v543
        %v674 = vpop.f32.mrb[0].mxu0
        %v675 = vadd.f32 %v498, %v674
        %v676 = vpop.f32.mrb[0].mxu0
        %v677 = vpop.f32.mrb[0].mxu0
        %v678 = vadd.f32 %v498, %v677
        %v679 = vpop.f32.mrb[0].mxu0
        %680 = vmatprep.mubr.bf16.mxu0 0
        %681 = vmatmul.mubr.bf16.gmra.mrb[0].mxu0 %v546
        %v682 = vpop.f32.mrb[0].mxu0
        %v683 = vadd.f32 %v498, %v682
        %v684 = vpop.f32.mrb[0].mxu0
        %v685 = vpop.f32.mrb[0].mxu0
        %v686 = vadd.f32 %v498, %v685
        %v687 = vpop.f32.mrb[0].mxu0
        %688 = vmatprep.mubr.bf16.mxu0 0
        %689 = vmatmul.mubr.bf16.gmra.mrb[0].mxu0 %v549
        %v690 = vpop.f32.mrb[0].mxu0
        %v691 = vadd.f32 %v498, %v690
        %v692 = vpop.f32.mrb[0].mxu0
        %v693 = vpop.f32.mrb[0].mxu0
        %v694 = vadd.f32 %v498, %v693
        %v695 = vpop.f32.mrb[0].mxu0
        %696 = vmatprep.mubr.bf16.mxu0 0
        %697 = vmatmul.mubr.bf16.gmra.mrb[0].mxu0 %v552
        %v698 = vpop.f32.mrb[0].mxu0
        %v699 = vadd.f32 %v498, %v698
        %v700 = vpop.f32.mrb[0].mxu0
        %v701 = vpop.f32.mrb[0].mxu0
        %v702 = vadd.f32 %v498, %v701
        %v703 = vpop.f32.mrb[0].mxu0
        %704 = vmatprep.mubr.bf16.mxu0 0
        %705 = vmatmul.mubr.bf16.gmra.mrb[0].mxu0 %v555
        %v706 = vpop.f32.mrb[0].mxu0
        %v707 = vadd.f32 %v498, %v706
        %v708 = vpop.f32.mrb[0].mxu0
        %v709 = vpop.f32.mrb[0].mxu0
        %v710 = vadd.f32 %v498, %v709
        %v711 = vpop.f32.mrb[0].mxu0
        %712 = vmatprep.mubr.bf16.mxu0 0
        %713 = vmatmul.mubr.bf16.gmra.mrb[0].mxu0 %v558
        %v714 = vpop.f32.mrb[0].mxu0
        %v715 = vadd.f32 %v498, %v714
        %v716 = vpop.f32.mrb[0].mxu0
        %v717 = vpop.f32.mrb[0].mxu0
        %v718 = vadd.f32 %v498, %v717
        %v719 = vpop.f32.mrb[0].mxu0
        %720 = vdwg.mxu0
        %v721 = vmax.f32 %v595, 0.0
        %v722 = vmax.f32 %v598, 0.0
        %v723 = vmax.f32 %v603, 0.0
        %v724 = vmax.f32 %v606, 0.0
        %v725 = vmax.f32 %v611, 0.0
        %v726 = vmax.f32 %v614, 0.0
        %v727 = vmax.f32 %v619, 0.0
        %v728 = vmax.f32 %v622, 0.0
        %v729 = vmax.f32 %v627, 0.0
        %v730 = vmax.f32 %v630, 0.0
        %v731 = vmax.f32 %v635, 0.0
        %v732 = vmax.f32 %v638, 0.0
        %v733 = vmax.f32 %v643, 0.0
        %v734 = vmax.f32 %v646, 0.0
        %v735 = vmax.f32 %v651, 0.0
        %v736 = vmax.f32 %v654, 0.0
        %v737 = vmax.f32 %v659, 0.0
        %v738 = vmax.f32 %v662, 0.0
        %v739 = vmax.f32 %v667, 0.0
        %v740 = vmax.f32 %v670, 0.0
        %v741 = vmax.f32 %v675, 0.0
        %v742 = vmax.f32 %v678, 0.0
        %v743 = vmax.f32 %v683, 0.0
        %v744 = vmax.f32 %v686, 0.0
        %v745 = vmax.f32 %v691, 0.0
        %v746 = vmax.f32 %v694, 0.0
        %v747 = vmax.f32 %v699, 0.0
        %v748 = vmax.f32 %v702, 0.0
        %v749 = vmax.f32 %v707, 0.0
        %v750 = vmax.f32 %v710, 0.0
        %v751 = vmax.f32 %v715, 0.0
        %v752 = vmax.f32 %v718, 0.0
        %v753 = vpack.c.bf16 %v722, %v721
        %v754 = vpack.c.bf16 %v724, %v723
        %v755 = vpack.c.bf16 %v726, %v725
        %v756 = vpack.c.bf16 %v728, %v727
        %v757 = vpack.c.bf16 %v730, %v729
        %v758 = vpack.c.bf16 %v732, %v731
        %v759 = vpack.c.bf16 %v734, %v733
        %v760 = vpack.c.bf16 %v736, %v735
        %v761 = vpack.c.bf16 %v738, %v737
        %v762 = vpack.c.bf16 %v740, %v739
        %v763 = vpack.c.bf16 %v742, %v741
        %v764 = vpack.c.bf16 %v744, %v743
        %v765 = vpack.c.bf16 %v746, %v745
        %v766 = vpack.c.bf16 %v748, %v747
        %v767 = vpack.c.bf16 %v750, %v749
        %v768 = vpack.c.bf16 %v752, %v751
        %v769 = vld [vmem:[%s1 + $0x18] sm:$0xf]
        %v770 = vld [vmem:[%s1 + $0x1c] sm:$0xf]
        %v771 = vld [vmem:[%s1 + $0x20] sm:$0xf]
        %v772 = vld [vmem:[%s1 + $0x24] sm:$0xf]
        %v773 = vlaneseq
        %v774 = vshrl.u32 %v773, 7
        %v775 = vsub.s32 2, %v774
        %v776 = vrot.slane %v172, %v775
        %v781 = vunpack.c.l.b16 %v769
        %v782 = vunpack.c.l.b16 %v770
        %v783 = vunpack.c.l.b16 %v771
        %v784 = vunpack.c.l.b16 %v772
        %v785 = vpack.c.b16 %v782, %v781
        %v786 = vpack.c.b16 %v784, %v783
        %v790 = vsel %vm511, %v753, 0
        %v793 = vsel %vm511, %v754, 0
        %v796 = vsel %vm511, %v755, 0
        %v799 = vsel %vm511, %v756, 0
        %v802 = vsel %vm511, %v757, 0
        %v805 = vsel %vm511, %v758, 0
        %v808 = vsel %vm511, %v759, 0
        %v811 = vsel %vm511, %v760, 0
        %v814 = vsel %vm511, %v761, 0
        %v817 = vsel %vm511, %v762, 0
        %v820 = vsel %vm511, %v763, 0
        %v823 = vsel %vm511, %v764, 0
        %v826 = vsel %vm511, %v765, 0
        %v829 = vsel %vm511, %v766, 0
        %v832 = vsel %vm511, %v767, 0
        %v835 = vsel %vm511, %v768, 0
        %837 = vmatprep.subr.bf16.mxu0 0
        %838 = vmatpush1.bf16.msra.mxu0 %v785
        %839 = vmatprep.subr.bf16.mxu0 0
        %840 = vmatpush1.bf16.msra.mxu0 %v786
        %841 = vmatprep.subr.bf16.mxu0 0
        %842 = vmatpush1.bf16.msra.mxu0 0
        %843 = vmatprep.subr.bf16.mxu0 0
        %844 = vmatpush1.bf16.msra.mxu0 0
        %845 = vmatprep.subr.bf16.mxu0 0
        %846 = vmatpush1.bf16.msra.mxu0 0
        %847 = vmatprep.subr.bf16.mxu0 0
        %848 = vmatpush1.bf16.msra.mxu0 0
        %849 = vmatprep.subr.bf16.mxu0 0
        %850 = vmatpush1.bf16.msra.mxu0 0
        %851 = vmatprep.subr.bf16.mxu0 0
        %852 = vmatpush1.bf16.msra.mxu0 0
        %853 = vmatprep.subr.bf16.mxu0 0
        %854 = vmatpush1.bf16.msra.mxu0 0
        %855 = vmatprep.subr.bf16.mxu0 0
        %856 = vmatpush1.bf16.msra.mxu0 0
        %857 = vmatprep.subr.bf16.mxu0 0
        %858 = vmatpush1.bf16.msra.mxu0 0
        %859 = vmatprep.subr.bf16.mxu0 0
        %860 = vmatpush1.bf16.msra.mxu0 0
        %861 = vmatprep.subr.bf16.mxu0 0
        %862 = vmatpush1.bf16.msra.mxu0 0
        %863 = vmatprep.subr.bf16.mxu0 0
        %864 = vmatpush1.bf16.msra.mxu0 0
        %865 = vmatprep.subr.bf16.mxu0 0
        %866 = vmatpush1.bf16.msra.mxu0 0
        %867 = vmatprep.subr.bf16.mxu0 0
        %868 = vmatpush1.bf16.msra.mxu0 0
        %869 = vmatprep.mubr.bf16.mxu0 0
        %870 = vmatmul.mubr.bf16.gmra.mrb[0].mxu0 %v790
        %v871 = vpop.f32.mrb[0].mxu0
        %v872 = vadd.f32 %v776, %v871
        %v873 = vpop.f32.mrb[0].mxu0
        %v874 = vpop.f32.mrb[0].mxu0
        %v875 = vadd.f32 %v776, %v874
        %v876 = vpop.f32.mrb[0].mxu0
        %877 = vmatprep.mubr.bf16.mxu0 0
        %878 = vmatmul.mubr.bf16.gmra.mrb[0].mxu0 %v793
        %v879 = vpop.f32.mrb[0].mxu0
        %v880 = vadd.f32 %v776, %v879
        %v881 = vpop.f32.mrb[0].mxu0
        %v882 = vpop.f32.mrb[0].mxu0
        %v883 = vadd.f32 %v776, %v882
        %v884 = vpop.f32.mrb[0].mxu0
        %885 = vmatprep.mubr.bf16.mxu0 0
        %886 = vmatmul.mubr.bf16.gmra.mrb[0].mxu0 %v796
        %v887 = vpop.f32.mrb[0].mxu0
        %v888 = vadd.f32 %v776, %v887
        %v889 = vpop.f32.mrb[0].mxu0
        %v890 = vpop.f32.mrb[0].mxu0
        %v891 = vadd.f32 %v776, %v890
        %v892 = vpop.f32.mrb[0].mxu0
        %893 = vmatprep.mubr.bf16.mxu0 0
        %894 = vmatmul.mubr.bf16.gmra.mrb[0].mxu0 %v799
        %v895 = vpop.f32.mrb[0].mxu0
        %v896 = vadd.f32 %v776, %v895
        %v897 = vpop.f32.mrb[0].mxu0
        %v898 = vpop.f32.mrb[0].mxu0
        %v899 = vadd.f32 %v776, %v898
        %v900 = vpop.f32.mrb[0].mxu0
        %901 = vmatprep.mubr.bf16.mxu0 0
        %902 = vmatmul.mubr.bf16.gmra.mrb[0].mxu0 %v802
        %v903 = vpop.f32.mrb[0].mxu0
        %v904 = vadd.f32 %v776, %v903
        %v905 = vpop.f32.mrb[0].mxu0
        %v906 = vpop.f32.mrb[0].mxu0
        %v907 = vadd.f32 %v776, %v906
        %v908 = vpop.f32.mrb[0].mxu0
        %909 = vmatprep.mubr.bf16.mxu0 0
        %910 = vmatmul.mubr.bf16.gmra.mrb[0].mxu0 %v805
        %v911 = vpop.f32.mrb[0].mxu0
        %v912 = vadd.f32 %v776, %v911
        %v913 = vpop.f32.mrb[0].mxu0
        %v914 = vpop.f32.mrb[0].mxu0
        %v915 = vadd.f32 %v776, %v914
        %v916 = vpop.f32.mrb[0].mxu0
        %917 = vmatprep.mubr.bf16.mxu0 0
        %918 = vmatmul.mubr.bf16.gmra.mrb[0].mxu0 %v808
        %v919 = vpop.f32.mrb[0].mxu0
        %v920 = vadd.f32 %v776, %v919
        %v921 = vpop.f32.mrb[0].mxu0
        %v922 = vpop.f32.mrb[0].mxu0
        %v923 = vadd.f32 %v776, %v922
        %v924 = vpop.f32.mrb[0].mxu0
        %925 = vmatprep.mubr.bf16.mxu0 0
        %926 = vmatmul.mubr.bf16.gmra.mrb[0].mxu0 %v811
        %v927 = vpop.f32.mrb[0].mxu0
        %v928 = vadd.f32 %v776, %v927
        %v929 = vpop.f32.mrb[0].mxu0
        %v930 = vpop.f32.mrb[0].mxu0
        %v931 = vadd.f32 %v776, %v930
        %v932 = vpop.f32.mrb[0].mxu0
        %933 = vmatprep.mubr.bf16.mxu0 0
        %934 = vmatmul.mubr.bf16.gmra.mrb[0].mxu0 %v814
        %v935 = vpop.f32.mrb[0].mxu0
        %v936 = vadd.f32 %v776, %v935
        %v937 = vpop.f32.mrb[0].mxu0
        %v938 = vpop.f32.mrb[0].mxu0
        %v939 = vadd.f32 %v776, %v938
        %v940 = vpop.f32.mrb[0].mxu0
        %941 = vmatprep.mubr.bf16.mxu0 0
        %942 = vmatmul.mubr.bf16.gmra.mrb[0].mxu0 %v817
        %v943 = vpop.f32.mrb[0].mxu0
        %v944 = vadd.f32 %v776, %v943
        %v945 = vpop.f32.mrb[0].mxu0
        %v946 = vpop.f32.mrb[0].mxu0
        %v947 = vadd.f32 %v776, %v946
        %v948 = vpop.f32.mrb[0].mxu0
        %949 = vmatprep.mubr.bf16.mxu0 0
        %950 = vmatmul.mubr.bf16.gmra.mrb[0].mxu0 %v820
        %v951 = vpop.f32.mrb[0].mxu0
        %v952 = vadd.f32 %v776, %v951
        %v953 = vpop.f32.mrb[0].mxu0
        %v954 = vpop.f32.mrb[0].mxu0
        %v955 = vadd.f32 %v776, %v954
        %v956 = vpop.f32.mrb[0].mxu0
        %957 = vmatprep.mubr.bf16.mxu0 0
        %958 = vmatmul.mubr.bf16.gmra.mrb[0].mxu0 %v823
        %v959 = vpop.f32.mrb[0].mxu0
        %v960 = vadd.f32 %v776, %v959
        %v961 = vpop.f32.mrb[0].mxu0
        %v962 = vpop.f32.mrb[0].mxu0
        %v963 = vadd.f32 %v776, %v962
        %v964 = vpop.f32.mrb[0].mxu0
        %965 = vmatprep.mubr.bf16.mxu0 0
        %966 = vmatmul.mubr.bf16.gmra.mrb[0].mxu0 %v826
        %v967 = vpop.f32.mrb[0].mxu0
        %v968 = vadd.f32 %v776, %v967
        %v969 = vpop.f32.mrb[0].mxu0
        %v970 = vpop.f32.mrb[0].mxu0
        %v971 = vadd.f32 %v776, %v970
        %v972 = vpop.f32.mrb[0].mxu0
        %973 = vmatprep.mubr.bf16.mxu0 0
        %974 = vmatmul.mubr.bf16.gmra.mrb[0].mxu0 %v829
        %v975 = vpop.f32.mrb[0].mxu0
        %v976 = vadd.f32 %v776, %v975
        %v977 = vpop.f32.mrb[0].mxu0
        %v978 = vpop.f32.mrb[0].mxu0
        %v979 = vadd.f32 %v776, %v978
        %v980 = vpop.f32.mrb[0].mxu0
        %981 = vmatprep.mubr.bf16.mxu0 0
        %982 = vmatmul.mubr.bf16.gmra.mrb[0].mxu0 %v832
        %v983 = vpop.f32.mrb[0].mxu0
        %v984 = vadd.f32 %v776, %v983
        %v985 = vpop.f32.mrb[0].mxu0
        %v986 = vpop.f32.mrb[0].mxu0
        %v987 = vadd.f32 %v776, %v986
        %v988 = vpop.f32.mrb[0].mxu0
        %989 = vmatprep.mubr.bf16.mxu0 0
        %990 = vmatmul.mubr.bf16.gmra.mrb[0].mxu0 %v835
        %v991 = vpop.f32.mrb[0].mxu0
        %v992 = vadd.f32 %v776, %v991
        %v993 = vpop.f32.mrb[0].mxu0
        %v994 = vpop.f32.mrb[0].mxu0
        %v995 = vadd.f32 %v776, %v994
        %v996 = vpop.f32.mrb[0].mxu0
        %997 = vdwg.mxu0
        %v998 = vmax.f32 %v872, 0.0
        %v999 = vmax.f32 %v875, 0.0
        %v1000 = vmax.f32 %v880, 0.0
        %v1001 = vmax.f32 %v883, 0.0
        %v1002 = vmax.f32 %v888, 0.0
        %v1003 = vmax.f32 %v891, 0.0
        %v1004 = vmax.f32 %v896, 0.0
        %v1005 = vmax.f32 %v899, 0.0
        %v1006 = vmax.f32 %v904, 0.0
        %v1007 = vmax.f32 %v907, 0.0
        %v1008 = vmax.f32 %v912, 0.0
        %v1009 = vmax.f32 %v915, 0.0
        %v1010 = vmax.f32 %v920, 0.0
        %v1011 = vmax.f32 %v923, 0.0
        %v1012 = vmax.f32 %v928, 0.0
        %v1013 = vmax.f32 %v931, 0.0
        %v1014 = vmax.f32 %v936, 0.0
        %v1015 = vmax.f32 %v939, 0.0
        %v1016 = vmax.f32 %v944, 0.0
        %v1017 = vmax.f32 %v947, 0.0
        %v1018 = vmax.f32 %v952, 0.0
        %v1019 = vmax.f32 %v955, 0.0
        %v1020 = vmax.f32 %v960, 0.0
        %v1021 = vmax.f32 %v963, 0.0
        %v1022 = vmax.f32 %v968, 0.0
        %v1023 = vmax.f32 %v971, 0.0
        %v1024 = vmax.f32 %v976, 0.0
        %v1025 = vmax.f32 %v979, 0.0
        %v1026 = vmax.f32 %v984, 0.0
        %v1027 = vmax.f32 %v987, 0.0
        %v1028 = vmax.f32 %v992, 0.0
        %v1029 = vmax.f32 %v995, 0.0
        %v1030 = vpack.c.bf16 %v999, %v998
        %v1031 = vpack.c.bf16 %v1001, %v1000
        %v1032 = vpack.c.bf16 %v1003, %v1002
        %v1033 = vpack.c.bf16 %v1005, %v1004
        %v1034 = vpack.c.bf16 %v1007, %v1006
        %v1035 = vpack.c.bf16 %v1009, %v1008
        %v1036 = vpack.c.bf16 %v1011, %v1010
        %v1037 = vpack.c.bf16 %v1013, %v1012
        %v1038 = vpack.c.bf16 %v1015, %v1014
        %v1039 = vpack.c.bf16 %v1017, %v1016
        %v1040 = vpack.c.bf16 %v1019, %v1018
        %v1041 = vpack.c.bf16 %v1021, %v1020
        %v1042 = vpack.c.bf16 %v1023, %v1022
        %v1043 = vpack.c.bf16 %v1025, %v1024
        %v1044 = vpack.c.bf16 %v1027, %v1026
        %v1045 = vpack.c.bf16 %v1029, %v1028
        %v1046 = vld [vmem:[%s1 + $0x28] sm:$0xf]
        %v1047 = vld [vmem:[%s1 + $0x2c] sm:$0xf]
        %v1048 = vld [vmem:[%s1 + $0x30] sm:$0xf]
        %v1049 = vld [vmem:[%s1 + $0x34] sm:$0xf]
        %v1050 = vlaneseq
        %v1051 = vshrl.u32 %v1050, 7
        %v1052 = vsub.s32 3, %v1051
        %v1053 = vrot.slane %v172, %v1052
        %v1058 = vunpack.c.l.b16 %v1046
        %v1059 = vunpack.c.l.b16 %v1047
        %v1060 = vunpack.c.l.b16 %v1048
        %v1061 = vunpack.c.l.b16 %v1049
        %v1062 = vpack.c.b16 %v1059, %v1058
        %v1063 = vpack.c.b16 %v1061, %v1060
        %v1067 = vsel %vm511, %v1030, 0
        %v1070 = vsel %vm511, %v1031, 0
        %v1073 = vsel %vm511, %v1032, 0
        %v1076 = vsel %vm511, %v1033, 0
        %v1079 = vsel %vm511, %v1034, 0
        %v1082 = vsel %vm511, %v1035, 0
        %v1085 = vsel %vm511, %v1036, 0
        %v1088 = vsel %vm511, %v1037, 0
        %v1091 = vsel %vm511, %v1038, 0
        %v1094 = vsel %vm511, %v1039, 0
        %v1097 = vsel %vm511, %v1040, 0
        %v1100 = vsel %vm511, %v1041, 0
        %v1103 = vsel %vm511, %v1042, 0
        %v1106 = vsel %vm511, %v1043, 0
        %v1109 = vsel %vm511, %v1044, 0
        %v1112 = vsel %vm511, %v1045, 0
        %1114 = vmatprep.subr.bf16.mxu0 0
        %1115 = vmatpush1.bf16.msra.mxu0 %v1062
        %1116 = vmatprep.subr.bf16.mxu0 0
        %1117 = vmatpush1.bf16.msra.mxu0 %v1063
        %1118 = vmatprep.subr.bf16.mxu0 0
        %1119 = vmatpush1.bf16.msra.mxu0 0
        %1120 = vmatprep.subr.bf16.mxu0 0
        %1121 = vmatpush1.bf16.msra.mxu0 0
        %1122 = vmatprep.subr.bf16.mxu0 0
        %1123 = vmatpush1.bf16.msra.mxu0 0
        %1124 = vmatprep.subr.bf16.mxu0 0
        %1125 = vmatpush1.bf16.msra.mxu0 0
        %1126 = vmatprep.subr.bf16.mxu0 0
        %1127 = vmatpush1.bf16.msra.mxu0 0
        %1128 = vmatprep.subr.bf16.mxu0 0
        %1129 = vmatpush1.bf16.msra.mxu0 0
        %1130 = vmatprep.subr.bf16.mxu0 0
        %1131 = vmatpush1.bf16.msra.mxu0 0
        %1132 = vmatprep.subr.bf16.mxu0 0
        %1133 = vmatpush1.bf16.msra.mxu0 0
        %1134 = vmatprep.subr.bf16.mxu0 0
        %1135 = vmatpush1.bf16.msra.mxu0 0
        %1136 = vmatprep.subr.bf16.mxu0 0
        %1137 = vmatpush1.bf16.msra.mxu0 0
        %1138 = vmatprep.subr.bf16.mxu0 0
        %1139 = vmatpush1.bf16.msra.mxu0 0
        %1140 = vmatprep.subr.bf16.mxu0 0
        %1141 = vmatpush1.bf16.msra.mxu0 0
        %1142 = vmatprep.subr.bf16.mxu0 0
        %1143 = vmatpush1.bf16.msra.mxu0 0
        %1144 = vmatprep.subr.bf16.mxu0 0
        %1145 = vmatpush1.bf16.msra.mxu0 0
        %1146 = vmatprep.mubr.bf16.mxu0 0
        %1147 = vmatmul.mubr.bf16.gmra.mrb[0].mxu0 %v1067
        %v1148 = vpop.f32.mrb[0].mxu0
        %v1149 = vadd.f32 %v1053, %v1148
        %v1150 = vpop.f32.mrb[0].mxu0
        %v1151 = vpop.f32.mrb[0].mxu0
        %v1152 = vadd.f32 %v1053, %v1151
        %v1153 = vpop.f32.mrb[0].mxu0
        %1154 = vmatprep.mubr.bf16.mxu0 0
        %1155 = vmatmul.mubr.bf16.gmra.mrb[0].mxu0 %v1070
        %v1156 = vpop.f32.mrb[0].mxu0
        %v1157 = vadd.f32 %v1053, %v1156
        %v1158 = vpop.f32.mrb[0].mxu0
        %v1159 = vpop.f32.mrb[0].mxu0
        %v1160 = vadd.f32 %v1053, %v1159
        %v1161 = vpop.f32.mrb[0].mxu0
        %1162 = vmatprep.mubr.bf16.mxu0 0
        %1163 = vmatmul.mubr.bf16.gmra.mrb[0].mxu0 %v1073
        %v1164 = vpop.f32.mrb[0].mxu0
        %v1165 = vadd.f32 %v1053, %v1164
        %v1166 = vpop.f32.mrb[0].mxu0
        %v1167 = vpop.f32.mrb[0].mxu0
        %v1168 = vadd.f32 %v1053, %v1167
        %v1169 = vpop.f32.mrb[0].mxu0
        %1170 = vmatprep.mubr.bf16.mxu0 0
        %1171 = vmatmul.mubr.bf16.gmra.mrb[0].mxu0 %v1076
        %v1172 = vpop.f32.mrb[0].mxu0
        %v1173 = vadd.f32 %v1053, %v1172
        %v1174 = vpop.f32.mrb[0].mxu0
        %v1175 = vpop.f32.mrb[0].mxu0
        %v1176 = vadd.f32 %v1053, %v1175
        %v1177 = vpop.f32.mrb[0].mxu0
        %1178 = vmatprep.mubr.bf16.mxu0 0
        %1179 = vmatmul.mubr.bf16.gmra.mrb[0].mxu0 %v1079
        %v1180 = vpop.f32.mrb[0].mxu0
        %v1181 = vadd.f32 %v1053, %v1180
        %v1182 = vpop.f32.mrb[0].mxu0
        %v1183 = vpop.f32.mrb[0].mxu0
        %v1184 = vadd.f32 %v1053, %v1183
        %v1185 = vpop.f32.mrb[0].mxu0
        %1186 = vmatprep.mubr.bf16.mxu0 0
        %1187 = vmatmul.mubr.bf16.gmra.mrb[0].mxu0 %v1082
        %v1188 = vpop.f32.mrb[0].mxu0
        %v1189 = vadd.f32 %v1053, %v1188
        %v1190 = vpop.f32.mrb[0].mxu0
        %v1191 = vpop.f32.mrb[0].mxu0
        %v1192 = vadd.f32 %v1053, %v1191
        %v1193 = vpop.f32.mrb[0].mxu0
        %1194 = vmatprep.mubr.bf16.mxu0 0
        %1195 = vmatmul.mubr.bf16.gmra.mrb[0].mxu0 %v1085
        %v1196 = vpop.f32.mrb[0].mxu0
        %v1197 = vadd.f32 %v1053, %v1196
        %v1198 = vpop.f32.mrb[0].mxu0
        %v1199 = vpop.f32.mrb[0].mxu0
        %v1200 = vadd.f32 %v1053, %v1199
        %v1201 = vpop.f32.mrb[0].mxu0
        %1202 = vmatprep.mubr.bf16.mxu0 0
        %1203 = vmatmul.mubr.bf16.gmra.mrb[0].mxu0 %v1088
        %v1204 = vpop.f32.mrb[0].mxu0
        %v1205 = vadd.f32 %v1053, %v1204
        %v1206 = vpop.f32.mrb[0].mxu0
        %v1207 = vpop.f32.mrb[0].mxu0
        %v1208 = vadd.f32 %v1053, %v1207
        %v1209 = vpop.f32.mrb[0].mxu0
        %1210 = vmatprep.mubr.bf16.mxu0 0
        %1211 = vmatmul.mubr.bf16.gmra.mrb[0].mxu0 %v1091
        %v1212 = vpop.f32.mrb[0].mxu0
        %v1213 = vadd.f32 %v1053, %v1212
        %v1214 = vpop.f32.mrb[0].mxu0
        %v1215 = vpop.f32.mrb[0].mxu0
        %v1216 = vadd.f32 %v1053, %v1215
        %v1217 = vpop.f32.mrb[0].mxu0
        %1218 = vmatprep.mubr.bf16.mxu0 0
        %1219 = vmatmul.mubr.bf16.gmra.mrb[0].mxu0 %v1094
        %v1220 = vpop.f32.mrb[0].mxu0
        %v1221 = vadd.f32 %v1053, %v1220
        %v1222 = vpop.f32.mrb[0].mxu0
        %v1223 = vpop.f32.mrb[0].mxu0
        %v1224 = vadd.f32 %v1053, %v1223
        %v1225 = vpop.f32.mrb[0].mxu0
        %1226 = vmatprep.mubr.bf16.mxu0 0
        %1227 = vmatmul.mubr.bf16.gmra.mrb[0].mxu0 %v1097
        %v1228 = vpop.f32.mrb[0].mxu0
        %v1229 = vadd.f32 %v1053, %v1228
        %v1230 = vpop.f32.mrb[0].mxu0
        %v1231 = vpop.f32.mrb[0].mxu0
        %v1232 = vadd.f32 %v1053, %v1231
        %v1233 = vpop.f32.mrb[0].mxu0
        %1234 = vmatprep.mubr.bf16.mxu0 0
        %1235 = vmatmul.mubr.bf16.gmra.mrb[0].mxu0 %v1100
        %v1236 = vpop.f32.mrb[0].mxu0
        %v1237 = vadd.f32 %v1053, %v1236
        %v1238 = vpop.f32.mrb[0].mxu0
        %v1239 = vpop.f32.mrb[0].mxu0
        %v1240 = vadd.f32 %v1053, %v1239
        %v1241 = vpop.f32.mrb[0].mxu0
        %1242 = vmatprep.mubr.bf16.mxu0 0
        %1243 = vmatmul.mubr.bf16.gmra.mrb[0].mxu0 %v1103
        %v1244 = vpop.f32.mrb[0].mxu0
        %v1245 = vadd.f32 %v1053, %v1244
        %v1246 = vpop.f32.mrb[0].mxu0
        %v1247 = vpop.f32.mrb[0].mxu0
        %v1248 = vadd.f32 %v1053, %v1247
        %v1249 = vpop.f32.mrb[0].mxu0
        %1250 = vmatprep.mubr.bf16.mxu0 0
        %1251 = vmatmul.mubr.bf16.gmra.mrb[0].mxu0 %v1106
        %v1252 = vpop.f32.mrb[0].mxu0
        %v1253 = vadd.f32 %v1053, %v1252
        %v1254 = vpop.f32.mrb[0].mxu0
        %v1255 = vpop.f32.mrb[0].mxu0
        %v1256 = vadd.f32 %v1053, %v1255
        %v1257 = vpop.f32.mrb[0].mxu0
        %1258 = vmatprep.mubr.bf16.mxu0 0
        %1259 = vmatmul.mubr.bf16.gmra.mrb[0].mxu0 %v1109
        %v1260 = vpop.f32.mrb[0].mxu0
        %v1261 = vadd.f32 %v1053, %v1260
        %v1262 = vpop.f32.mrb[0].mxu0
        %v1263 = vpop.f32.mrb[0].mxu0
        %v1264 = vadd.f32 %v1053, %v1263
        %v1265 = vpop.f32.mrb[0].mxu0
        %1266 = vmatprep.mubr.bf16.mxu0 0
        %1267 = vmatmul.mubr.bf16.gmra.mrb[0].mxu0 %v1112
        %v1268 = vpop.f32.mrb[0].mxu0
        %v1269 = vadd.f32 %v1053, %v1268
        %v1270 = vpop.f32.mrb[0].mxu0
        %v1271 = vpop.f32.mrb[0].mxu0
        %v1272 = vadd.f32 %v1053, %v1271
        %v1273 = vpop.f32.mrb[0].mxu0
        %1274 = vdwg.mxu0
        %v1275 = vmax.f32 %v1149, 0.0
        %v1276 = vmax.f32 %v1152, 0.0
        %v1277 = vmax.f32 %v1157, 0.0
        %v1278 = vmax.f32 %v1160, 0.0
        %v1279 = vmax.f32 %v1165, 0.0
        %v1280 = vmax.f32 %v1168, 0.0
        %v1281 = vmax.f32 %v1173, 0.0
        %v1282 = vmax.f32 %v1176, 0.0
        %v1283 = vmax.f32 %v1181, 0.0
        %v1284 = vmax.f32 %v1184, 0.0
        %v1285 = vmax.f32 %v1189, 0.0
        %v1286 = vmax.f32 %v1192, 0.0
        %v1287 = vmax.f32 %v1197, 0.0
        %v1288 = vmax.f32 %v1200, 0.0
        %v1289 = vmax.f32 %v1205, 0.0
        %v1290 = vmax.f32 %v1208, 0.0
        %v1291 = vmax.f32 %v1213, 0.0
        %v1292 = vmax.f32 %v1216, 0.0
        %v1293 = vmax.f32 %v1221, 0.0
        %v1294 = vmax.f32 %v1224, 0.0
        %v1295 = vmax.f32 %v1229, 0.0
        %v1296 = vmax.f32 %v1232, 0.0
        %v1297 = vmax.f32 %v1237, 0.0
        %v1298 = vmax.f32 %v1240, 0.0
        %v1299 = vmax.f32 %v1245, 0.0
        %v1300 = vmax.f32 %v1248, 0.0
        %v1301 = vmax.f32 %v1253, 0.0
        %v1302 = vmax.f32 %v1256, 0.0
        %v1303 = vmax.f32 %v1261, 0.0
        %v1304 = vmax.f32 %v1264, 0.0
        %v1305 = vmax.f32 %v1269, 0.0
        %v1306 = vmax.f32 %v1272, 0.0
        %v1307 = vpack.c.bf16 %v1276, %v1275
        %v1308 = vpack.c.bf16 %v1278, %v1277
        %v1309 = vpack.c.bf16 %v1280, %v1279
        %v1310 = vpack.c.bf16 %v1282, %v1281
        %v1311 = vpack.c.bf16 %v1284, %v1283
        %v1312 = vpack.c.bf16 %v1286, %v1285
        %v1313 = vpack.c.bf16 %v1288, %v1287
        %v1314 = vpack.c.bf16 %v1290, %v1289
        %v1315 = vpack.c.bf16 %v1292, %v1291
        %v1316 = vpack.c.bf16 %v1294, %v1293
        %v1317 = vpack.c.bf16 %v1296, %v1295
        %v1318 = vpack.c.bf16 %v1298, %v1297
        %v1319 = vpack.c.bf16 %v1300, %v1299
        %v1320 = vpack.c.bf16 %v1302, %v1301
        %v1321 = vpack.c.bf16 %v1304, %v1303
        %v1322 = vpack.c.bf16 %v1306, %v1305
        %v1323 = vld [vmem:[%s1 + $0x38] sm:$0xf]
        %v1324 = vld [vmem:[%s1 + $0x3c] sm:$0xf]
        %v1327 = vunpack.c.l.b16 %v1323
        %v1328 = vunpack.c.l.b16 %v1324
        %v1329 = vpack.c.b16 %v1328, %v1327
        %v1331 = vsel %vm511, %v1329, 0
        %v1334 = vsel %vm511, %v1307, 0
        %v1337 = vsel %vm511, %v1308, 0
        %v1340 = vsel %vm511, %v1309, 0
        %v1343 = vsel %vm511, %v1310, 0
        %v1346 = vsel %vm511, %v1311, 0
        %v1349 = vsel %vm511, %v1312, 0
        %v1352 = vsel %vm511, %v1313, 0
        %v1355 = vsel %vm511, %v1314, 0
        %v1358 = vsel %vm511, %v1315, 0
        %v1361 = vsel %vm511, %v1316, 0
        %v1364 = vsel %vm511, %v1317, 0
        %v1367 = vsel %vm511, %v1318, 0
        %v1370 = vsel %vm511, %v1319, 0
        %v1373 = vsel %vm511, %v1320, 0
        %v1376 = vsel %vm511, %v1321, 0
        %v1379 = vsel %vm511, %v1322, 0
        %1381 = vmatprep.subr.bf16.mxu0 0
        %1382 = vmatpush1.bf16.xpose.msra.mxu0 %v1334
        %1383 = vmatprep.subr.bf16.mxu0 0
        %1384 = vmatpush1.bf16.xpose.msra.mxu0 %v1337
        %1385 = vmatprep.subr.bf16.mxu0 0
        %1386 = vmatpush1.bf16.xpose.msra.mxu0 %v1340
        %1387 = vmatprep.subr.bf16.mxu0 0
        %1388 = vmatpush1.bf16.xpose.msra.mxu0 %v1343
        %1389 = vmatprep.subr.bf16.mxu0 0
        %1390 = vmatpush1.bf16.xpose.msra.mxu0 %v1346
        %1391 = vmatprep.subr.bf16.mxu0 0
        %1392 = vmatpush1.bf16.xpose.msra.mxu0 %v1349
        %1393 = vmatprep.subr.bf16.mxu0 0
        %1394 = vmatpush1.bf16.xpose.msra.mxu0 %v1352
        %1395 = vmatprep.subr.bf16.mxu0 0
        %1396 = vmatpush1.bf16.xpose.msra.mxu0 %v1355
        %1397 = vmatprep.subr.bf16.mxu0 0
        %1398 = vmatpush1.bf16.xpose.msra.mxu0 %v1358
        %1399 = vmatprep.subr.bf16.mxu0 0
        %1400 = vmatpush1.bf16.xpose.msra.mxu0 %v1361
        %1401 = vmatprep.subr.bf16.mxu0 0
        %1402 = vmatpush1.bf16.xpose.msra.mxu0 %v1364
        %1403 = vmatprep.subr.bf16.mxu0 0
        %1404 = vmatpush1.bf16.xpose.msra.mxu0 %v1367
        %1405 = vmatprep.subr.bf16.mxu0 0
        %1406 = vmatpush1.bf16.xpose.msra.mxu0 %v1370
        %1407 = vmatprep.subr.bf16.mxu0 0
        %1408 = vmatpush1.bf16.xpose.msra.mxu0 %v1373
        %1409 = vmatprep.subr.bf16.mxu0 0
        %1410 = vmatpush1.bf16.xpose.msra.mxu0 %v1376
        %1411 = vmatprep.subr.bf16.mxu0 0
        %1412 = vmatpush1.bf16.xpose.msra.mxu0 %v1379
        %1413 = vmatprep.mubr.bf16.mxu0 0
        %1414 = vmatmul.mubr.bf16.gmra.mrb[0].mxu0 %v1331
        %v1415 = vpop.f32.mrb[0].mxu0
        %v1416 = vadd.f32 0.0, %v1415
        %v1417 = vpop.f32.mrb[0].mxu0
        %v1418 = vadd.f32 0.0, %v1417
        %v1419 = vpop.f32.mrb[0].mxu0
        %v1420 = vpop.f32.mrb[0].mxu0
        %1421 = vdwg.mxu0
        %1423 = vset.pattern.permute.xlu0 0
        %1424 = vperm.xlu0 %1423, %v172
        %v1425 = vpop.permute.xlu0 %1424
        %v1426 = vrot.slane %v1425, 4
        %v1428 = vadd.f32 %v1416, %v1426
        %v1429 = vadd.f32 %v1418, %v1426
        %v1432 = vcombine.low %v1428, %v1429
        %v1434 = vunpack.c.l.s4 1966171168
        %v1435 = vunpack.c.0.s8 %v1434
        %v1436 = vlaneseq
        %v1437 = vshrl.u32 %v1436, 7
        %v1438 = vsub.s32 %v1435, %v1437
        %v1439 = vrot.slane %v1432, %v1438
        %v1441 = vunpack.c.l.s4 1966171168
        %v1442 = vunpack.c.0.s8 %v1441
        %v1443 = vlaneseq
        %v1444 = vshrl.u32 %v1443, 7
        %v1445 = vsub.s32 %v1442, %v1444
        %v1446 = vrot.slane %v1439, %v1445
        %v1448 = vlaneseq
        %vm1449 = vcmp.ge.s32.totalorder %v1448, 0
        %vm1450 = vcmp.lt.s32.totalorder %v1448, 256
        %vm1451 = vmand %vm1449, %vm1450
        %1452 = vst.msk [vmem:[%s164] sm:$0x3] %vm1451, %v1446
        %s1453 = sand.u32 %s93, 1
        %s1454 = scalar_lea.sflag [#allocation3], %s1453
        %s1455 = sand.u32 %s93, 1
        %s1456 = smul.addr %s1455, 2
        %s1457 = scalar_lea.vmem [#allocation2], %s1456
        // Predicated region
        $region33: #{tpu_custom_call.1} parent=31 // pred_check
          %p1458 = pneg %p103
        $region34: #{tpu_custom_call.1} parent=31 // pred_check_branch
          %1460 = sbr.rel (%p1458) target = $region36
        $region35: #{tpu_custom_call.1} parent=31 // pred_region
          %s1462 = ssub.s32 32, 32
          %1463 = vsyncadd %s1454, %s1462
          %s1464 = smul.addr %s17, 2
          %s1465 = smul.addr %s1464, 16
          %s1466 = scalar_lea.hbm %s3, %s1465
          %s1468 = sshll.u32 %s1457, 4
          %s1469 = int_to_ptr.vmem [resolvable:$true] %s1468
          %1471 = dma.vmem_to_hbm [thread:$0]  %s1469, 32, %s1466, %s1454
        $region36: #{tpu_custom_call.1} parent=31 // pred_fallthru
          _
      $region32: #{tpu_custom_call.1} parent=5 // pred_fallthru
        _
      %p1472 = scmp.le.s32.totalorder 2, %s12
      // Predicated region
      $region37: #{tpu_custom_call.1} parent=5 // pred_check
        %p1473 = pneg %p1472
      $region38: #{tpu_custom_call.1} parent=5 // pred_check_branch
        %1475 = sbr.rel (%p1473) target = $region40
      $region39: #{tpu_custom_call.1} parent=5 // pred_region
        %s1476 = ssub.s32 %s12, 2
        // Predicated region
        $region41: #{tpu_custom_call.1} parent=39 // pred_check
          %p1477 = pneg %p109
        $region42: #{tpu_custom_call.1} parent=39 // pred_check_branch
          %1479 = sbr.rel (%p1477) target = $region44
        $region43: #{tpu_custom_call.1} parent=39 // pred_region
          %s1480 = sand.u32 %s94, 1
          %s1481 = scalar_lea.sflag [#allocation3], %s1480
          %s1482 = sand.u32 %s94, 1
          %s1483 = smul.addr %s1482, 2
          %s1484 = scalar_lea.vmem [#allocation2], %s1483
          %1485 = dma.done %s1481, 32
        $region44: #{tpu_custom_call.1} parent=39 // pred_fallthru
          _
      $region40: #{tpu_custom_call.1} parent=5 // pred_fallthru
        _
    $region6: #{tpu_custom_call.1} parent=1 // loop_footer
      %s16 = sadd.s32 1, %s12
    $region7: #{tpu_custom_call.1} parent=1 // loop_footer_branch
      %11 = sbr.rel target = $region3
    $region8: #{tpu_custom_call.1} parent=1 // loop_exit
      _
    %1486 = vsyncpa [#allocation3], 1
    %s1487 = scalar_lea.sflag [#allocation3], 1
    %1488 = vsyncpa %s1487, 1

</llo_original>
